<compile_context>
chip_gen: v7x
topology: tpu7x:2x2x1
jax: 0.10.0
libtpu: 0.0.40
codegen_flags: <defaults>
</compile_context>

<pallas_src>
import jax
import jax.numpy as jnp
from jax import lax
from jax.experimental import pallas as pl
from jax.experimental.pallas import tpu as pltpu

NEG_SLOPE = 0.01  # PyTorch nn.LeakyReLU default negative_slope


def projection_head_kernel(x_ref, w1_ref, b1_ref, w2_ref, b2_ref, o_ref, acc_ref):
    # x_ref:  (tm, d)   batch tile
    # w1_ref: (th, d)   first linear weight chunk, PyTorch (out, in) layout
    # b1_ref: (1, th)   first linear bias chunk
    # w2_ref: (d, th)   second linear weight chunk, PyTorch (out, in) layout
    # b2_ref: (1, d)    second linear bias
    # o_ref:  (tm, d)   output tile (revisited across the hidden-chunk axis)
    # acc_ref:(tm, d)   f32 accumulator scratch
    kh = pl.program_id(1)

    @pl.when(kh == 0)
    def _init():
        acc_ref[...] = jnp.zeros_like(acc_ref)

    x = x_ref[...]

    # Linear 1 on this hidden chunk: h = x @ W1_chunk.T  (contract feature dim with W1 "in" dim).
    h = lax.dot_general(
        x, w1_ref[...],
        dimension_numbers=(((1,), (1,)), ((), ())),
        preferred_element_type=jnp.float32,
    )
    h = h + b1_ref[...].astype(jnp.float32)
    h = jnp.where(h > 0, h, NEG_SLOPE * h)  # LeakyReLU in f32

    # Linear 2 partial sum: acc += h_chunk @ W2[:, chunk].T
    acc_ref[...] += lax.dot_general(
        h.astype(w2_ref.dtype), w2_ref[...],
        dimension_numbers=(((1,), (1,)), ((), ())),
        preferred_element_type=jnp.float32,
    )

    @pl.when(kh == pl.num_programs(1) - 1)
    def _finalize():
        o_ref[...] = (acc_ref[...] + b2_ref[...].astype(jnp.float32)).astype(o_ref.dtype)


def _pick_tm(batch):
    """Batch tile: fill MXU M dim, multiple of 8, >=2 grid steps for megacore when possible."""
    if batch <= 16:
        return batch  # tiny batch: single full-extent tile
    tm = min(256, (batch // 2 // 8) * 8)
    return max(8, tm)


def _pick_th(hidden, max_th=1024):
    """Hidden-dim chunk: bounded resident weights; chunk must exactly divide hidden (no padding)."""
    if hidden <= max_th:
        return hidden
    for cand in range(max_th, 0, -128):
        if cand % 128 == 0 and hidden % cand == 0:
            return cand
    return hidden  # no clean 128-multiple divisor; keep full hidden (still correct)


def projection_head(x, w1, b1, w2, b2, *, tm=None, th=None):
    """x: (B, d). PyTorch layout: w1 (4d, d), b1 (4d,), w2 (d, 4d), b2 (d,)."""
    B, d = x.shape
    h = w1.shape[0]
    assert w1.shape == (h, d) and w2.shape == (d, h)
    assert b1.shape == (h,) and b2.shape == (d,)

    if tm is None:
        tm = _pick_tm(B)
    if th is None:
        th = _pick_th(h)
    assert h % th == 0, "hidden chunk must evenly divide the hidden dim"

    b1_2d = b1.reshape(1, h)
    b2_2d = b2.reshape(1, d)

    nb = pl.cdiv(B, tm)
    nh = h // th

    return pl.pallas_call(
        projection_head_kernel,
        out_shape=jax.ShapeDtypeStruct((B, d), x.dtype),
        grid_spec=pltpu.PrefetchScalarGridSpec(
            num_scalar_prefetch=0,
            grid=(nb, nh),  # hidden-chunk (reduction) axis innermost
            in_specs=[
                pl.BlockSpec((tm, d), lambda i, kh: (i, 0)),    # x tile
                pl.BlockSpec((th, d), lambda i, kh: (kh, 0)),   # W1 chunk, (out, in) layout
                pl.BlockSpec((1, th), lambda i, kh: (0, kh)),   # b1 chunk
                pl.BlockSpec((d, th), lambda i, kh: (0, kh)),   # W2 chunk, (out, in) layout
                pl.BlockSpec((1, d), lambda i, kh: (0, 0)),     # b2
            ],
            out_specs=pl.BlockSpec((tm, d), lambda i, kh: (i, 0)),
            scratch_shapes=[pltpu.VMEM((tm, d), jnp.float32)],
        ),
        compiler_params=pltpu.CompilerParams(
            dimension_semantics=("parallel", "arbitrary"),
            vmem_limit_bytes=48 * 1024 * 1024,  # above 16/32 MiB defaults, below v7x 64 MiB physical
        ),
    )(x, w1, b1_2d, w2, b2_2d)


def projection_head_ref(x, w1, b1, w2, b2):
    """High-precision pure-JAX reference (f32 matmuls at HIGHEST precision)."""
    hdn = lax.dot_general(
        x, w1, dimension_numbers=(((1,), (1,)), ((), ())),
        precision=lax.Precision.HIGHEST, preferred_element_type=jnp.float32,
    ) + b1
    hdn = jnp.where(hdn > 0, hdn, NEG_SLOPE * hdn)
    out = lax.dot_general(
        hdn, w2, dimension_numbers=(((1,), (1,)), ((), ())),
        precision=lax.Precision.HIGHEST, preferred_element_type=jnp.float32,
    ) + b2
    return out.astype(x.dtype)


if __name__ == "__main__":
    d_model = 128          # lane-dense feature dim (multiple of 128)
    batch = 64             # small demo batch -> tm=32, 2 batch grid steps
    hidden = 4 * d_model   # 512

    key = jax.random.PRNGKey(0)
    kx, kw1, kb1, kw2, kb2 = jax.random.split(key, 5)

    # Deterministic synthetic parameters (PyTorch nn.Linear shapes: W=(out, in), b=(out,))
    x = jax.random.normal(kx, (batch, d_model), dtype=jnp.float32)
    w1 = jax.random.normal(kw1, (hidden, d_model), dtype=jnp.float32) * 0.05
    b1 = jax.random.normal(kb1, (hidden,), dtype=jnp.float32) * 0.05
    w2 = jax.random.normal(kw2, (d_model, hidden), dtype=jnp.float32) * 0.05
    b2 = jax.random.normal(kb2, (d_model,), dtype=jnp.float32) * 0.05

    out = jax.block_until_ready(projection_head(x, w1, b1, w2, b2))

    ref = projection_head_ref(x, w1, b1, w2, b2)
    assert out.shape == (batch, d_model)
    # f32 MXU matmuls use multi-pass bf16 decompositions; tolerance accounts for that while
    # still catching real bugs (shape/transpose/bias/activation errors are O(1) off).
    assert jnp.allclose(out, ref, atol=1e-2, rtol=1e-2), (
        f"mismatch vs reference, max abs err = {float(jnp.max(jnp.abs(out - ref)))}"
    )

    print("KERNEL_OK")
</pallas_src>

<mosaic_0001>
module attributes {stable_mosaic.version = 11 : i64} {
  func.func @projection_head_kernel(%arg0: i32, %arg1: i32, %arg2: memref<32x128xf32, #tpu.memory_space<vmem>>, %arg3: memref<512x128xf32, #tpu.memory_space<vmem>>, %arg4: memref<1x512xf32, #tpu.memory_space<vmem>>, %arg5: memref<128x512xf32, #tpu.memory_space<vmem>>, %arg6: memref<1x128xf32, #tpu.memory_space<vmem>>, %arg7: memref<32x128xf32, #tpu.memory_space<vmem>>, %arg8: memref<32x128xf32, #tpu.memory_space<vmem>>) attributes {dimension_semantics = [#tpu.dimension_semantics<parallel>, #tpu.dimension_semantics<arbitrary>], iteration_bounds = array<i64: 2, 1>, scalar_prefetch = 0 : i64, scratch_operands = 1 : i64, tpu.core_type = #tpu.core_type<tc>, window_params = [{transform_indices = @transform_0, window_bounds = array<i64: 32, 128>}, {transform_indices = @transform_1, window_bounds = array<i64: 512, 128>}, {transform_indices = @transform_2, window_bounds = array<i64: 1, 512>}, {transform_indices = @transform_3, window_bounds = array<i64: 128, 512>}, {pipeline_mode = #tpu.pipeline_mode<synchronous>, transform_indices = @transform_4, window_bounds = array<i64: 1, 128>}, {transform_indices = @transform_5, window_bounds = array<i64: 32, 128>}]} {
    %c0_i32 = arith.constant 0 : i32
    %0 = arith.cmpi eq, %arg1, %c0_i32 : i32
    %1 = arith.extui %0 : i1 to i32
    %c0_i32_0 = arith.constant 0 : i32
    %2 = arith.cmpi ne, %1, %c0_i32_0 : i32
    scf.if %2 {
      %cst_17 = arith.constant 0.000000e+00 : f32
      %22 = vector.broadcast %cst_17 : f32 to vector<32x128xf32>
      %c0_18 = arith.constant 0 : index
      %c0_19 = arith.constant 0 : index
      %23 = vector.load %arg8[%c0_18, %c0_19] : memref<32x128xf32, #tpu.memory_space<vmem>>, vector<32x128xf32>
      tpu.vector_store %arg8[%c0_18, %c0_19], %22 {strides = array<i32>} : memref<32x128xf32, #tpu.memory_space<vmem>>, vector<32x128xf32>,
    } else {
    }
    %c0 = arith.constant 0 : index
    %c0_1 = arith.constant 0 : index
    %3 = vector.load %arg2[%c0, %c0_1] : memref<32x128xf32, #tpu.memory_space<vmem>>, vector<32x128xf32>
    %c0_2 = arith.constant 0 : index
    %c0_3 = arith.constant 0 : index
    %4 = vector.load %arg3[%c0_2, %c0_3] : memref<512x128xf32, #tpu.memory_space<vmem>>, vector<512x128xf32>
    %cst = arith.constant dense<0.000000e+00> : vector<32x512xf32>
    %5 = tpu.matmul %3, %4, %cst {dimension_numbers = #tpu.dot_dimension_numbers<[1], [1], [0], [0], [0, 0, 1, 0], [], []>} : vector<32x128xf32>, vector<512x128xf32>, vector<32x512xf32> -> vector<32x512xf32>
    %c0_4 = arith.constant 0 : index
    %c0_5 = arith.constant 0 : index
    %6 = vector.load %arg4[%c0_4, %c0_5] : memref<1x512xf32, #tpu.memory_space<vmem>>, vector<1x512xf32>
    %7 = vector.broadcast %6 : vector<1x512xf32> to vector<32x512xf32>
    %8 = arith.addf %5, %7 : vector<32x512xf32>
    %cst_6 = arith.constant 0.000000e+00 : f32
    %9 = vector.broadcast %cst_6 : f32 to vector<32x512xf32>
    %10 = arith.cmpf ogt, %8, %9 : vector<32x512xf32>
    %cst_7 = arith.constant 0.00999999977 : f32
    %11 = vector.broadcast %cst_7 : f32 to vector<32x512xf32>
    %12 = arith.mulf %11, %8 : vector<32x512xf32>
    %13 = arith.select %10, %8, %12 : vector<32x512xi1>, vector<32x512xf32>
    %c0_8 = arith.constant 0 : index
    %c0_9 = arith.constant 0 : index
    %14 = vector.load %arg8[%c0_8, %c0_9] : memref<32x128xf32, #tpu.memory_space<vmem>>, vector<32x128xf32>
    %c0_10 = arith.constant 0 : index
    %c0_11 = arith.constant 0 : index
    %15 = vector.load %arg5[%c0_10, %c0_11] : memref<128x512xf32, #tpu.memory_space<vmem>>, vector<128x512xf32>
    %cst_12 = arith.constant dense<0.000000e+00> : vector<32x128xf32>
    %16 = tpu.matmul %13, %15, %cst_12 {dimension_numbers = #tpu.dot_dimension_numbers<[1], [1], [0], [0], [0, 0, 1, 0], [], []>} : vector<32x512xf32>, vector<128x512xf32>, vector<32x128xf32> -> vector<32x128xf32>
    %17 = arith.addf %14, %16 : vector<32x128xf32>
    %c0_13 = arith.constant 0 : index
    %c0_14 = arith.constant 0 : index
    %18 = vector.load %arg8[%c0_13, %c0_14] : memref<32x128xf32, #tpu.memory_space<vmem>>, vector<32x128xf32>
    tpu.vector_store %arg8[%c0_13, %c0_14], %17 {strides = array<i32>} : memref<32x128xf32, #tpu.memory_space<vmem>>, vector<32x128xf32>,
    %c0_i32_15 = arith.constant 0 : i32
    %19 = arith.cmpi eq, %arg1, %c0_i32_15 : i32
    %20 = arith.extui %19 : i1 to i32
    %c0_i32_16 = arith.constant 0 : i32
    %21 = arith.cmpi ne, %20, %c0_i32_16 : i32
    scf.if %21 {
      %c0_17 = arith.constant 0 : index
      %c0_18 = arith.constant 0 : index
      %22 = vector.load %arg8[%c0_17, %c0_18] : memref<32x128xf32, #tpu.memory_space<vmem>>, vector<32x128xf32>
      %c0_19 = arith.constant 0 : index
      %c0_20 = arith.constant 0 : index
      %23 = vector.load %arg6[%c0_19, %c0_20] : memref<1x128xf32, #tpu.memory_space<vmem>>, vector<1x128xf32>
      %24 = vector.broadcast %23 : vector<1x128xf32> to vector<32x128xf32>
      %25 = arith.addf %22, %24 : vector<32x128xf32>
      %c0_21 = arith.constant 0 : index
      %c0_22 = arith.constant 0 : index
      %26 = vector.load %arg7[%c0_21, %c0_22] : memref<32x128xf32, #tpu.memory_space<vmem>>, vector<32x128xf32>
      tpu.vector_store %arg7[%c0_21, %c0_22], %25 {strides = array<i32>} : memref<32x128xf32, #tpu.memory_space<vmem>>, vector<32x128xf32>,
    } else {
    }
    return
  }
  func.func @transform_0(%arg0: i32, %arg1: i32) -> (i32, i32) {
    %c0_i32 = arith.constant 0 : i32
    %c0_i32_0 = arith.constant 0 : i32
    return %arg0, %c0_i32 : i32, i32
  }
  func.func @transform_1(%arg0: i32, %arg1: i32) -> (i32, i32) {
    %c0_i32 = arith.constant 0 : i32
    %c0_i32_0 = arith.constant 0 : i32
    return %arg1, %c0_i32 : i32, i32
  }
  func.func @transform_2(%arg0: i32, %arg1: i32) -> (i32, i32) {
    %c0_i32 = arith.constant 0 : i32
    %c0_i32_0 = arith.constant 0 : i32
    return %c0_i32, %arg1 : i32, i32
  }
  func.func @transform_3(%arg0: i32, %arg1: i32) -> (i32, i32) {
    %c0_i32 = arith.constant 0 : i32
    %c0_i32_0 = arith.constant 0 : i32
    return %c0_i32, %arg1 : i32, i32
  }
  func.func @transform_4(%arg0: i32, %arg1: i32) -> (i32, i32) {
    %c0_i32 = arith.constant 0 : i32
    %c0_i32_0 = arith.constant 0 : i32
    %c0_i32_1 = arith.constant 0 : i32
    return %c0_i32, %c0_i32_0 : i32, i32
  }
  func.func @transform_5(%arg0: i32, %arg1: i32) -> (i32, i32) {
    %c0_i32 = arith.constant 0 : i32
    %c0_i32_0 = arith.constant 0 : i32
    return %arg0, %c0_i32 : i32, i32
  }
}

</mosaic_0001>

<llo_original>
// kernel: tpu_custom_call.1
$region0: #{tpu_custom_call.1}
  #allocation0 [shape = 'u32[]', space=smem, size = 0x4, offset = 0x4, fixed_abs, tag = 'smem constant byte address 0x4 - core index']
  #allocation1 [shape = 'u32[144,128]{1,0:T(1,128)}', space=vmem, size = 0x12000, scoped, tag = 'internal scratch']
  #allocation2 [shape = 'f32[32,128]{1,0:T(8,128)}', space=vmem, size = 0x4000, scoped, tag = 'scratch operand']
  %s0 = inlined_call_operand.hbm [shape: f32[64,128], index: 0, kind: input, shape index: {}]
  %s1 = inlined_call_operand.hbm [shape: f32[512,128], index: 1, kind: input, shape index: {}]
  %s2 = inlined_call_operand.vmem [shape: f32[1,512], index: 2, kind: input, shape index: {}]
  %s3 = inlined_call_operand.hbm [shape: f32[128,512], index: 3, kind: input, shape index: {}]
  %s4 = inlined_call_operand.vmem [shape: f32[1,128], index: 4, kind: input, shape index: {}]
  %s5 = inlined_call_operand.hbm [shape: f32[64,128], index: 5, kind: output, shape index: {}]
  %s6 = sld [smem:[#allocation0]]
  $region73: #{tpu_custom_call.1} parent=0
    _
  %s8 = ssub.s32 1, %s6
  %s9 = scalar_select 0, %s8, %s6
  $region1: #{tpu_custom_call.1} parent=0
    #allocation3 [shape = 'u8[32768]{0}', space=vmem, size = 0x8000, scoped, tag = 'input window, operand 0']
    #allocation4 [shape = 's32[2]{0}', space=sflag, size = 0x8, scoped, tag = 'scoped memory for tpu_custom_call.1']
    #allocation5 [shape = 's32[2]{0}', space=sflag, size = 0x8, scoped, tag = 'scoped memory for tpu_custom_call.1']
    #allocation6 [shape = 'u8[262144]{0}', space=vmem, size = 0x40000, scoped, tag = 'input window, operand 1, single buffered']
    #allocation7 [shape = 's32[1]{0}', space=sflag, size = 0x4, scoped, tag = 'scoped memory for tpu_custom_call.1']
    #allocation8 [shape = 'u8[262144]{0}', space=vmem, size = 0x40000, scoped, tag = 'input window, operand 3, single buffered']
    #allocation9 [shape = 'u8[32768]{0}', space=vmem, size = 0x8000, scoped, tag = 'output window, operand 0']
    %10 = vsyncpa [#allocation4], 0
    %s11 = scalar_lea.sflag [#allocation4], 1
    %12 = vsyncpa %s11, 0
    %13 = vsyncpa [#allocation7], 0
    %14 = vsyncpa [#allocation5], 0
    %s15 = scalar_lea.sflag [#allocation5], 1
    %16 = vsyncpa %s15, 0
    loop: start=0, step=1, limit=4
    $region2: #{tpu_custom_call.1} parent=1 // loop_pre_header
      _
    $region3: #{tpu_custom_call.1} parent=1 // loop_header
      %s18 = sphi 0, %s22
      %p19 = scmp.ge.s32.totalorder %s18, 4
      %s25 = sphi 0, %s37
      %s26 = sphi 0, %s33
      %s27 = sphi 0, %s25
      %s28 = sphi 0, %s26
      %s29 = sphi 0, %s27
      %s30 = sphi 0, %s28
      %s40 = sphi 0, %s42
      %s43 = sphi 0, %s40
      %s44 = sphi 0, %s43
      %s60 = sphi 0, %s44
      %s66 = sphi 0, %s68
      %s69 = sphi 0, %s66
      %s70 = sphi 0, %s69
      %s86 = sphi 0, %s70
      %s92 = sphi 0, %s94
      %s95 = sphi 0, %s92
      %s96 = sphi 0, %s95
      %s112 = sphi 0, %s96
      %s118 = sphi 0, %s120
      %s121 = sphi 0, %s118
      %s122 = sphi 0, %s121
      %s138 = sphi 0, %s122
      %s142 = sphi 0, %s142
      %s144 = sphi 0, %s142
      %s145 = sphi 0, %s144
      %s159 = sphi 0, %s145
      %s165 = sphi 0, %s167
      %s168 = sphi 0, %s165
      %s169 = sphi 0, %s168
      %s185 = sphi 0, %s169
    $region4: #{tpu_custom_call.1} parent=1 // loop_header_branch
      %21 = sbr.rel (%p19) target = $region8
    $region5: #{tpu_custom_call.1} parent=1 // loop_body
      %s23 = ssub.s32 %s18, 1
      %s24 = ssub.s32 %s18, 2
      %s31 = sadd.s32 1, %s26
      %p32 = scmp.ge.s32.totalorder %s31, 1
      %s33 = scalar_select %p32, 0, %s31
      %s34 = sadd.s32 1, %s25
      %s35 = scalar_select %p32, %s34, %s25
      %p36 = scmp.ge.s32.totalorder %s35, 2
      %s37 = scalar_select %p36, 0, %s35
      %s38 = ssub.s32 %s25, %s37
      %p39 = scmp.eq.s32.totalorder %s38, 0
      %s41 = sadd.s32 %s40, 1
      %s42 = scalar_select %p39, %s40, %s41
      %p45 = pneg %p39
      %p46 = scmp.eq.s32.totalorder %s18, 1
      %p47 = por %p45, %p46
      %p48 = scmp.ne.s32.totalorder %s40, %s43
      %p49 = scmp.eq.s32.totalorder %s18, 0
      %p50 = por %p48, %p49
      %p51 = scmp.ne.s32.totalorder %s40, %s43
      %p52 = scmp.eq.s32.totalorder %s23, 1
      %p53 = por %p51, %p52
      %p54 = scmp.ne.s32.totalorder %s43, %s44
      %p55 = scmp.eq.s32.totalorder %s23, 0
      %p56 = por %p54, %p55
      %p57 = scmp.ne.s32.totalorder %s43, %s44
      %p58 = scmp.eq.s32.totalorder %s24, 1
      %p59 = por %p57, %p58
      %p61 = scmp.ne.s32.totalorder %s44, %s60
      %p62 = scmp.eq.s32.totalorder %s24, 0
      %p63 = por %p61, %p62
      %s64 = ssub.s32 %s26, %s33
      %p65 = scmp.eq.s32.totalorder %s64, 0
      %s67 = sadd.s32 %s66, 1
      %s68 = scalar_select %p65, %s66, %s67
      %p71 = pneg %p65
      %p72 = scmp.eq.s32.totalorder %s18, 1
      %p73 = por %p71, %p72
      %p74 = scmp.ne.s32.totalorder %s66, %s69
      %p75 = scmp.eq.s32.totalorder %s18, 0
      %p76 = por %p74, %p75
      %p77 = scmp.ne.s32.totalorder %s66, %s69
      %p78 = scmp.eq.s32.totalorder %s23, 1
      %p79 = por %p77, %p78
      %p80 = scmp.ne.s32.totalorder %s69, %s70
      %p81 = scmp.eq.s32.totalorder %s23, 0
      %p82 = por %p80, %p81
      %p83 = scmp.ne.s32.totalorder %s69, %s70
      %p84 = scmp.eq.s32.totalorder %s24, 1
      %p85 = por %p83, %p84
      %p87 = scmp.ne.s32.totalorder %s70, %s86
      %p88 = scmp.eq.s32.totalorder %s24, 0
      %p89 = por %p87, %p88
      %s90 = ssub.s32 %s26, %s33
      %p91 = scmp.eq.s32.totalorder %s90, 0
      %s93 = sadd.s32 %s92, 1
      %s94 = scalar_select %p91, %s92, %s93
      %p97 = pneg %p91
      %p98 = scmp.eq.s32.totalorder %s18, 1
      %p99 = por %p97, %p98
      %p100 = scmp.ne.s32.totalorder %s92, %s95
      %p101 = scmp.eq.s32.totalorder %s18, 0
      %p102 = por %p100, %p101
      %p103 = scmp.ne.s32.totalorder %s92, %s95
      %p104 = scmp.eq.s32.totalorder %s23, 1
      %p105 = por %p103, %p104
      %p106 = scmp.ne.s32.totalorder %s95, %s96
      %p107 = scmp.eq.s32.totalorder %s23, 0
      %p108 = por %p106, %p107
      %p109 = scmp.ne.s32.totalorder %s95, %s96
      %p110 = scmp.eq.s32.totalorder %s24, 1
      %p111 = por %p109, %p110
      %p113 = scmp.ne.s32.totalorder %s96, %s112
      %p114 = scmp.eq.s32.totalorder %s24, 0
      %p115 = por %p113, %p114
      %s116 = ssub.s32 %s26, %s33
      %p117 = scmp.eq.s32.totalorder %s116, 0
      %s119 = sadd.s32 %s118, 1
      %s120 = scalar_select %p117, %s118, %s119
      %p123 = pneg %p117
      %p124 = scmp.eq.s32.totalorder %s18, 1
      %p125 = por %p123, %p124
      %p126 = scmp.ne.s32.totalorder %s118, %s121
      %p127 = scmp.eq.s32.totalorder %s18, 0
      %p128 = por %p126, %p127
      %p129 = scmp.ne.s32.totalorder %s118, %s121
      %p130 = scmp.eq.s32.totalorder %s23, 1
      %p131 = por %p129, %p130
      %p132 = scmp.ne.s32.totalorder %s121, %s122
      %p133 = scmp.eq.s32.totalorder %s23, 0
      %p134 = por %p132, %p133
      %p135 = scmp.ne.s32.totalorder %s121, %s122
      %p136 = scmp.eq.s32.totalorder %s24, 1
      %p137 = por %p135, %p136
      %p139 = scmp.ne.s32.totalorder %s122, %s138
      %p140 = scmp.eq.s32.totalorder %s24, 0
      %p141 = por %p139, %p140
      %s143 = sadd.s32 %s142, 1
      %p146 = scmp.eq.s32.totalorder %s18, 1
      %p147 = scmp.ne.s32.totalorder %s142, %s144
      %p148 = scmp.eq.s32.totalorder %s18, 0
      %p149 = por %p147, %p148
      %p150 = scmp.ne.s32.totalorder %s142, %s144
      %p151 = scmp.eq.s32.totalorder %s23, 1
      %p152 = por %p150, %p151
      %p153 = scmp.ne.s32.totalorder %s144, %s145
      %p154 = scmp.eq.s32.totalorder %s23, 0
      %p155 = por %p153, %p154
      %p156 = scmp.ne.s32.totalorder %s144, %s145
      %p157 = scmp.eq.s32.totalorder %s24, 1
      %p158 = por %p156, %p157
      %p160 = scmp.ne.s32.totalorder %s145, %s159
      %p161 = scmp.eq.s32.totalorder %s24, 0
      %p162 = por %p160, %p161
      %s163 = ssub.s32 %s25, %s37
      %p164 = scmp.eq.s32.totalorder %s163, 0
      %s166 = sadd.s32 %s165, 1
      %s167 = scalar_select %p164, %s165, %s166
      %p170 = pneg %p164
      %p171 = scmp.eq.s32.totalorder %s18, 1
      %p172 = por %p170, %p171
      %p173 = scmp.ne.s32.totalorder %s165, %s168
      %p174 = scmp.eq.s32.totalorder %s18, 0
      %p175 = por %p173, %p174
      %p176 = scmp.ne.s32.totalorder %s165, %s168
      %p177 = scmp.eq.s32.totalorder %s23, 1
      %p178 = por %p176, %p177
      %p179 = scmp.ne.s32.totalorder %s168, %s169
      %p180 = scmp.eq.s32.totalorder %s23, 0
      %p181 = por %p179, %p180
      %p182 = scmp.ne.s32.totalorder %s168, %s169
      %p183 = scmp.eq.s32.totalorder %s24, 1
      %p184 = por %p182, %p183
      %p186 = scmp.ne.s32.totalorder %s169, %s185
      %p187 = scmp.eq.s32.totalorder %s24, 0
      %p188 = por %p186, %p187
      %p189 = scmp.le.s32.totalorder 1, %s18
      %p190 = scmp.lt.s32.totalorder %s18, 3
      %p191 = pnand %p189, %p190
      %p192 = pneg %p191
      // Predicated region
      $region9: #{tpu_custom_call.1} parent=5 // pred_check
        _
      $region10: #{tpu_custom_call.1} parent=5 // pred_check_branch
        %194 = sbr.rel (%p191) target = $region12
      $region11: #{tpu_custom_call.1} parent=5 // pred_region
        %s195 = ssub.s32 %s18, 1
        // Predicated region
        $region13: #{tpu_custom_call.1} parent=11 // pred_check
          %p196 = pneg %p82
        $region14: #{tpu_custom_call.1} parent=11 // pred_check_branch
          %198 = sbr.rel (%p196) target = $region16
        $region15: #{tpu_custom_call.1} parent=11 // pred_region
          %s199 = smul.u32 64, %s28
          %s201 = ssub.s32 8192, 8192
          %202 = vsyncadd [#allocation7], %s201
          %s203 = smul.addr %s199, 128
          %s204 = scalar_lea.hbm %s1, %s203
          %s205 = sshll.u32 [#allocation6], 4
          %s206 = int_to_ptr.vmem [resolvable:$true] %s205
          %211 = dma.hbm_to_vmem [thread:$0]  %s204, 8192, %s206, [#allocation7], 128, 128, 8
        $region16: #{tpu_custom_call.1} parent=11 // pred_fallthru
          _
        // Predicated region
        $region17: #{tpu_custom_call.1} parent=11 // pred_check
          %p212 = pneg %p108
        $region18: #{tpu_custom_call.1} parent=11 // pred_check_branch
          %214 = sbr.rel (%p212) target = $region20
        $region19: #{tpu_custom_call.1} parent=11 // pred_region
          %s215 = smul.u32 4, %s28
          %p216 = scmp.lt.s32.totalorder %s215, 3
          %s217 = scalar_select %p216, %s215, 3
          %s218 = scalar_lea.vmem %s2, %s217
          %s219 = smul.u32 4, %s28
        $region20: #{tpu_custom_call.1} parent=11 // pred_fallthru
          _
        // Predicated region
        $region21: #{tpu_custom_call.1} parent=11 // pred_check
          %p220 = pneg %p134
        $region22: #{tpu_custom_call.1} parent=11 // pred_check_branch
          %222 = sbr.rel (%p220) target = $region24
        $region23: #{tpu_custom_call.1} parent=11 // pred_region
          %s223 = smul.u32 4, %s28
          %s225 = ssub.s32 8192, 8192
          %226 = vsyncadd [#allocation7], %s225
          %s227 = smul.addr %s223, 128
          %s228 = scalar_lea.hbm %s3, %s227
          %s229 = sshll.u32 [#allocation8], 4
          %s230 = int_to_ptr.vmem [resolvable:$true] %s229
          %235 = dma.hbm_to_vmem [thread:$0]  %s228, 8192, %s230, [#allocation7], 512, 512, 32
        $region24: #{tpu_custom_call.1} parent=11 // pred_fallthru
          _
        // Predicated region
        $region25: #{tpu_custom_call.1} parent=11 // pred_check
          %p236 = pneg %p155
        $region26: #{tpu_custom_call.1} parent=11 // pred_check_branch
          %238 = sbr.rel (%p236) target = $region28
        $region27: #{tpu_custom_call.1} parent=11 // pred_region
          _
        $region28: #{tpu_custom_call.1} parent=11 // pred_fallthru
          _
      $region12: #{tpu_custom_call.1} parent=5 // pred_fallthru
        _
      %p239 = scmp.lt.s32.totalorder %s18, 2
      // Predicated region
      $region29: #{tpu_custom_call.1} parent=5 // pred_check
        %p240 = pneg %p239
      $region30: #{tpu_custom_call.1} parent=5 // pred_check_branch
        %242 = sbr.rel (%p240) target = $region32
      $region31: #{tpu_custom_call.1} parent=5 // pred_region
        // Predicated region
        $region33: #{tpu_custom_call.1} parent=31 // pred_check
          %p243 = pneg %p50
        $region34: #{tpu_custom_call.1} parent=31 // pred_check_branch
          %245 = sbr.rel (%p243) target = $region36
        $region35: #{tpu_custom_call.1} parent=31 // pred_region
          %s246 = sand.u32 %s40, 1
          %s247 = scalar_lea.sflag [#allocation4], %s246
          %s248 = sand.u32 %s40, 1
          %s249 = smul.addr %s248, 32
          %s250 = scalar_lea.vmem [#allocation3], %s249
          %s251 = smul.u32 4, %s25
          %s253 = ssub.s32 512, 512
          %254 = vsyncadd %s247, %s253
          %s255 = smul.addr %s251, 128
          %s256 = scalar_lea.hbm %s0, %s255
          %s257 = sshll.u32 %s250, 4
          %s258 = int_to_ptr.vmem [resolvable:$true] %s257
          %263 = dma.hbm_to_vmem [thread:$0]  %s256, 512, %s258, %s247, 128, 128, 8
        $region36: #{tpu_custom_call.1} parent=31 // pred_fallthru
          _
      $region32: #{tpu_custom_call.1} parent=5 // pred_fallthru
        _
      %p264 = scmp.le.s32.totalorder 1, %s18
      %p265 = scmp.lt.s32.totalorder %s18, 3
      %p266 = pnand %p264, %p265
      %p267 = pneg %p266
      // Predicated region
      $region37: #{tpu_custom_call.1} parent=5 // pred_check
        _
      $region38: #{tpu_custom_call.1} parent=5 // pred_check_branch
        %269 = sbr.rel (%p266) target = $region40
      $region39: #{tpu_custom_call.1} parent=5 // pred_region
        %s270 = ssub.s32 %s18, 1
        %s271 = sand.u32 %s43, 1
        %s272 = scalar_lea.sflag [#allocation4], %s271
        %s273 = sand.u32 %s43, 1
        %s274 = smul.addr %s273, 32
        %s275 = scalar_lea.vmem [#allocation3], %s274
        // Predicated region
        $region41: #{tpu_custom_call.1} parent=39 // pred_check
          %p276 = pneg %p56
        $region42: #{tpu_custom_call.1} parent=39 // pred_check_branch
          %278 = sbr.rel (%p276) target = $region44
        $region43: #{tpu_custom_call.1} parent=39 // pred_region
          %279 = dma.done %s272, 512
        $region44: #{tpu_custom_call.1} parent=39 // pred_fallthru
          _
        // Predicated region
        $region45: #{tpu_custom_call.1} parent=39 // pred_check
          %p280 = pneg %p82
        $region46: #{tpu_custom_call.1} parent=39 // pred_check_branch
          %282 = sbr.rel (%p280) target = $region48
        $region47: #{tpu_custom_call.1} parent=39 // pred_region
          %283 = dma.done [#allocation7], 8192
        $region48: #{tpu_custom_call.1} parent=39 // pred_fallthru
          _
        // Predicated region
        $region49: #{tpu_custom_call.1} parent=39 // pred_check
          %p284 = pneg %p134
        $region50: #{tpu_custom_call.1} parent=39 // pred_check_branch
          %286 = sbr.rel (%p284) target = $region52
        $region51: #{tpu_custom_call.1} parent=39 // pred_region
          %287 = dma.done [#allocation7], 8192
        $region52: #{tpu_custom_call.1} parent=39 // pred_fallthru
          _
        %s288 = sand.u32 %s43, 1
        %s289 = scalar_lea.sflag [#allocation4], %s288
        %s290 = sand.u32 %s43, 1
        %s291 = smul.addr %s290, 32
        %s292 = scalar_lea.vmem [#allocation3], %s291
        %p293 = pneg %p56
        %p294 = pneg %p53
        %p295 = pneg %p82
        %p296 = pneg %p79
        %s297 = smul.u32 4, %s28
        %p298 = scmp.lt.s32.totalorder %s297, 3
        %s299 = scalar_select %p298, %s297, 3
        %s300 = scalar_lea.vmem %s2, %s299
        %p301 = pneg %p108
        %p302 = pneg %p105
        %p303 = pneg %p134
        %p304 = pneg %p131
        %p305 = pneg %p155
        %p306 = pneg %p152
        %p307 = pneg %p181
        %p308 = pneg %p178
        %s309 = sand.u32 %s168, 1
        %s310 = scalar_lea.sflag [#allocation5], %s309
        %s311 = sand.u32 %s168, 1
        %s312 = smul.addr %s311, 32
        %s313 = scalar_lea.vmem [#allocation9], %s312
        %s314 = smul.u32 4, %s27
        %s315 = smul.u32 64, %s28
        %s316 = smul.u32 4, %s28
        %p317 = scmp.lt.s32.totalorder %s316, 3
        %s318 = scalar_select %p317, %s316, 3
        %s319 = scalar_lea.vmem %s2, %s318
        %s320 = smul.u32 4, %s28
        %s321 = smul.u32 4, %s28
        %s322 = smul.u32 4, %s27
        %p323 = scmp.eq.s32.totalorder %s28, 0
        // Predicated region
        $region53: #{tpu_custom_call.1} parent=39 // pred_check
          %p324 = pneg %p323
        $region54: #{tpu_custom_call.1} parent=39 // pred_check_branch
          %326 = sbr.rel (%p324) target = $region56
        $region55: #{tpu_custom_call.1} parent=39 // pred_region
          %327 = vst [vmem:[#allocation2] sm:$0xff] 0.0
          %328 = vst [vmem:[#allocation2 + $0x8] sm:$0xff] 0.0
          %329 = vst [vmem:[#allocation2 + $0x10] sm:$0xff] 0.0
          %330 = vst [vmem:[#allocation2 + $0x18] sm:$0xff] 0.0
        $region56: #{tpu_custom_call.1} parent=39 // pred_fallthru
          _
        %v331 = vld [vmem:[%s275] sm:$0xff]
        %v332 = vld [vmem:[%s275 + $0x8] sm:$0xff]
        %v333 = vld [vmem:[%s275 + $0x10] sm:$0xff]
        %v334 = vld [vmem:[%s275 + $0x18] sm:$0xff]
        %v335 = vld [vmem:[#allocation6] sm:$0xff]
        %v336 = vld [vmem:[#allocation6 + $0x8] sm:$0xff]
        %v337 = vld [vmem:[#allocation6 + $0x10] sm:$0xff]
        %v338 = vld [vmem:[#allocation6 + $0x18] sm:$0xff]
        %v339 = vld [vmem:[#allocation6 + $0x20] sm:$0xff]
        %v340 = vld [vmem:[#allocation6 + $0x28] sm:$0xff]
        %v341 = vld [vmem:[#allocation6 + $0x30] sm:$0xff]
        %v342 = vld [vmem:[#allocation6 + $0x38] sm:$0xff]
        %v343 = vld [vmem:[#allocation6 + $0x40] sm:$0xff]
        %v344 = vld [vmem:[#allocation6 + $0x48] sm:$0xff]
        %v345 = vld [vmem:[#allocation6 + $0x50] sm:$0xff]
        %v346 = vld [vmem:[#allocation6 + $0x58] sm:$0xff]
        %v347 = vld [vmem:[#allocation6 + $0x60] sm:$0xff]
        %v348 = vld [vmem:[#allocation6 + $0x68] sm:$0xff]
        %v349 = vld [vmem:[#allocation6 + $0x70] sm:$0xff]
        %v350 = vld [vmem:[#allocation6 + $0x78] sm:$0xff]
        %v351 = vld [vmem:[#allocation6 + $0x80] sm:$0xff]
        %v352 = vld [vmem:[#allocation6 + $0x88] sm:$0xff]
        %v353 = vld [vmem:[#allocation6 + $0x90] sm:$0xff]
        %v354 = vld [vmem:[#allocation6 + $0x98] sm:$0xff]
        %v355 = vld [vmem:[#allocation6 + $0xa0] sm:$0xff]
        %v356 = vld [vmem:[#allocation6 + $0xa8] sm:$0xff]
        %v357 = vld [vmem:[#allocation6 + $0xb0] sm:$0xff]
        %v358 = vld [vmem:[#allocation6 + $0xb8] sm:$0xff]
        %v359 = vld [vmem:[#allocation6 + $0xc0] sm:$0xff]
        %v360 = vld [vmem:[#allocation6 + $0xc8] sm:$0xff]
        %v361 = vld [vmem:[#allocation6 + $0xd0] sm:$0xff]
        %v362 = vld [vmem:[#allocation6 + $0xd8] sm:$0xff]
        %v363 = vld [vmem:[#allocation6 + $0xe0] sm:$0xff]
        %v364 = vld [vmem:[#allocation6 + $0xe8] sm:$0xff]
        %v365 = vld [vmem:[#allocation6 + $0xf0] sm:$0xff]
        %v366 = vld [vmem:[#allocation6 + $0xf8] sm:$0xff]
        %v367 = vld [vmem:[#allocation6 + $0x100] sm:$0xff]
        %v368 = vld [vmem:[#allocation6 + $0x108] sm:$0xff]
        %v369 = vld [vmem:[#allocation6 + $0x110] sm:$0xff]
        %v370 = vld [vmem:[#allocation6 + $0x118] sm:$0xff]
        %v371 = vld [vmem:[#allocation6 + $0x120] sm:$0xff]
        %v372 = vld [vmem:[#allocation6 + $0x128] sm:$0xff]
        %v373 = vld [vmem:[#allocation6 + $0x130] sm:$0xff]
        %v374 = vld [vmem:[#allocation6 + $0x138] sm:$0xff]
        %v375 = vld [vmem:[#allocation6 + $0x140] sm:$0xff]
        %v376 = vld [vmem:[#allocation6 + $0x148] sm:$0xff]
        %v377 = vld [vmem:[#allocation6 + $0x150] sm:$0xff]
        %v378 = vld [vmem:[#allocation6 + $0x158] sm:$0xff]
        %v379 = vld [vmem:[#allocation6 + $0x160] sm:$0xff]
        %v380 = vld [vmem:[#allocation6 + $0x168] sm:$0xff]
        %v381 = vld [vmem:[#allocation6 + $0x170] sm:$0xff]
        %v382 = vld [vmem:[#allocation6 + $0x178] sm:$0xff]
        %v383 = vld [vmem:[#allocation6 + $0x180] sm:$0xff]
        %v384 = vld [vmem:[#allocation6 + $0x188] sm:$0xff]
        %v385 = vld [vmem:[#allocation6 + $0x190] sm:$0xff]
        %v386 = vld [vmem:[#allocation6 + $0x198] sm:$0xff]
        %v387 = vld [vmem:[#allocation6 + $0x1a0] sm:$0xff]
        %v388 = vld [vmem:[#allocation6 + $0x1a8] sm:$0xff]
        %v389 = vld [vmem:[#allocation6 + $0x1b0] sm:$0xff]
        %v390 = vld [vmem:[#allocation6 + $0x1b8] sm:$0xff]
        %v391 = vld [vmem:[#allocation6 + $0x1c0] sm:$0xff]
        %v392 = vld [vmem:[#allocation6 + $0x1c8] sm:$0xff]
        %v393 = vld [vmem:[#allocation6 + $0x1d0] sm:$0xff]
        %v394 = vld [vmem:[#allocation6 + $0x1d8] sm:$0xff]
        %v395 = vld [vmem:[#allocation6 + $0x1e0] sm:$0xff]
        %v396 = vld [vmem:[#allocation6 + $0x1e8] sm:$0xff]
        %v397 = vld [vmem:[#allocation6 + $0x1f0] sm:$0xff]
        %v398 = vld [vmem:[#allocation6 + $0x1f8] sm:$0xff]
        %v399 = vld [vmem:[%s319] sm:$0xf]
        %v401 = vlaneseq
        %v402 = vshrl.u32 %v401, 7
        %v403 = vsub.s32 0, %v402
        %v404 = vrot.slane %v399, %v403
        %v405 = vlaneseq
        %v406 = vshrl.u32 %v405, 7
        %v407 = vsub.s32 1, %v406
        %v408 = vrot.slane %v399, %v407
        %v409 = vlaneseq
        %v410 = vshrl.u32 %v409, 7
        %v411 = vsub.s32 2, %v410
        %v412 = vrot.slane %v399, %v411
        %v413 = vlaneseq
        %v414 = vshrl.u32 %v413, 7
        %v415 = vsub.s32 3, %v414
        %v416 = vrot.slane %v399, %v415
        %421 = vmatprep.subr.mxu0 0.0
        %422 = vmatpush1.xpose.msra.mxu0 %v335
        %423 = vmatprep.subr.mxu0 0.0
        %424 = vmatpush1.xpose.msra.mxu0 %v336
        %425 = vmatprep.subr.mxu0 0.0
        %426 = vmatpush1.xpose.msra.mxu0 %v337
        %427 = vmatprep.subr.mxu0 0.0
        %428 = vmatpush1.xpose.msra.mxu0 %v338
        %429 = vmatprep.subr.mxu0 0.0
        %430 = vmatpush1.xpose.msra.mxu0 %v339
        %431 = vmatprep.subr.mxu0 0.0
        %432 = vmatpush1.xpose.msra.mxu0 %v340
        %433 = vmatprep.subr.mxu0 0.0
        %434 = vmatpush1.xpose.msra.mxu0 %v341
        %435 = vmatprep.subr.mxu0 0.0
        %436 = vmatpush1.xpose.msra.mxu0 %v342
        %437 = vmatprep.subr.mxu0 0.0
        %438 = vmatpush1.xpose.msra.mxu0 %v343
        %439 = vmatprep.subr.mxu0 0.0
        %440 = vmatpush1.xpose.msra.mxu0 %v344
        %441 = vmatprep.subr.mxu0 0.0
        %442 = vmatpush1.xpose.msra.mxu0 %v345
        %443 = vmatprep.subr.mxu0 0.0
        %444 = vmatpush1.xpose.msra.mxu0 %v346
        %445 = vmatprep.subr.mxu0 0.0
        %446 = vmatpush1.xpose.msra.mxu0 %v347
        %447 = vmatprep.subr.mxu0 0.0
        %448 = vmatpush1.xpose.msra.mxu0 %v348
        %449 = vmatprep.subr.mxu0 0.0
        %450 = vmatpush1.xpose.msra.mxu0 %v349
        %451 = vmatprep.subr.mxu0 0.0
        %452 = vmatpush1.xpose.msra.mxu0 %v350
        %453 = vmatprep.subr.mxu0 0.0
        %454 = vmatpush1.xpose.msra.mxu0 %v351
        %455 = vmatprep.subr.mxu0 0.0
        %456 = vmatpush1.xpose.msra.mxu0 %v352
        %457 = vmatprep.subr.mxu0 0.0
        %458 = vmatpush1.xpose.msra.mxu0 %v353
        %459 = vmatprep.subr.mxu0 0.0
        %460 = vmatpush1.xpose.msra.mxu0 %v354
        %461 = vmatprep.subr.mxu0 0.0
        %462 = vmatpush1.xpose.msra.mxu0 %v355
        %463 = vmatprep.subr.mxu0 0.0
        %464 = vmatpush1.xpose.msra.mxu0 %v356
        %465 = vmatprep.subr.mxu0 0.0
        %466 = vmatpush1.xpose.msra.mxu0 %v357
        %467 = vmatprep.subr.mxu0 0.0
        %468 = vmatpush1.xpose.msra.mxu0 %v358
        %469 = vmatprep.subr.mxu0 0.0
        %470 = vmatpush1.xpose.msra.mxu0 %v359
        %471 = vmatprep.subr.mxu0 0.0
        %472 = vmatpush1.xpose.msra.mxu0 %v360
        %473 = vmatprep.subr.mxu0 0.0
        %474 = vmatpush1.xpose.msra.mxu0 %v361
        %475 = vmatprep.subr.mxu0 0.0
        %476 = vmatpush1.xpose.msra.mxu0 %v362
        %477 = vmatprep.subr.mxu0 0.0
        %478 = vmatpush1.xpose.msra.mxu0 %v363
        %479 = vmatprep.subr.mxu0 0.0
        %480 = vmatpush1.xpose.msra.mxu0 %v364
        %481 = vmatprep.subr.mxu0 0.0
        %482 = vmatpush1.xpose.msra.mxu0 %v365
        %483 = vmatprep.subr.mxu0 0.0
        %484 = vmatpush1.xpose.msra.mxu0 %v366
        %485 = vmatprep.mubr.f32.mxu0 0.0
        %486 = vmatmul.mubr.f32.gmra.mrb[0].mxu0 %v331
        %v487 = vpop.f32.mrb[0].mxu0
        %v488 = vadd.f32 %v404, %v487
        %v489 = vpop.f32.mrb[0].mxu0
        %v490 = vadd.f32 %v408, %v489
        %491 = vmatprep.mubr.f32.mxu0 0.0
        %492 = vmatmul.mubr.f32.gmra.mrb[0].mxu0 %v332
        %v493 = vpop.f32.mrb[0].mxu0
        %v494 = vadd.f32 %v404, %v493
        %v495 = vpop.f32.mrb[0].mxu0
        %v496 = vadd.f32 %v408, %v495
        %497 = vmatprep.mubr.f32.mxu0 0.0
        %498 = vmatmul.mubr.f32.gmra.mrb[0].mxu0 %v333
        %v499 = vpop.f32.mrb[0].mxu0
        %v500 = vadd.f32 %v404, %v499
        %v501 = vpop.f32.mrb[0].mxu0
        %v502 = vadd.f32 %v408, %v501
        %503 = vmatprep.mubr.f32.mxu0 0.0
        %504 = vmatmul.mubr.f32.gmra.mrb[0].mxu0 %v334
        %v505 = vpop.f32.mrb[0].mxu0
        %v506 = vadd.f32 %v404, %v505
        %v507 = vpop.f32.mrb[0].mxu0
        %v508 = vadd.f32 %v408, %v507
        %509 = vdwg.mxu0
        %510 = vmatprep.subr.mxu0 0.0
        %511 = vmatpush1.xpose.msra.mxu0 %v367
        %512 = vmatprep.subr.mxu0 0.0
        %513 = vmatpush1.xpose.msra.mxu0 %v368
        %514 = vmatprep.subr.mxu0 0.0
        %515 = vmatpush1.xpose.msra.mxu0 %v369
        %516 = vmatprep.subr.mxu0 0.0
        %517 = vmatpush1.xpose.msra.mxu0 %v370
        %518 = vmatprep.subr.mxu0 0.0
        %519 = vmatpush1.xpose.msra.mxu0 %v371
        %520 = vmatprep.subr.mxu0 0.0
        %521 = vmatpush1.xpose.msra.mxu0 %v372
        %522 = vmatprep.subr.mxu0 0.0
        %523 = vmatpush1.xpose.msra.mxu0 %v373
        %524 = vmatprep.subr.mxu0 0.0
        %525 = vmatpush1.xpose.msra.mxu0 %v374
        %526 = vmatprep.subr.mxu0 0.0
        %527 = vmatpush1.xpose.msra.mxu0 %v375
        %528 = vmatprep.subr.mxu0 0.0
        %529 = vmatpush1.xpose.msra.mxu0 %v376
        %530 = vmatprep.subr.mxu0 0.0
        %531 = vmatpush1.xpose.msra.mxu0 %v377
        %532 = vmatprep.subr.mxu0 0.0
        %533 = vmatpush1.xpose.msra.mxu0 %v378
        %534 = vmatprep.subr.mxu0 0.0
        %535 = vmatpush1.xpose.msra.mxu0 %v379
        %536 = vmatprep.subr.mxu0 0.0
        %537 = vmatpush1.xpose.msra.mxu0 %v380
        %538 = vmatprep.subr.mxu0 0.0
        %539 = vmatpush1.xpose.msra.mxu0 %v381
        %540 = vmatprep.subr.mxu0 0.0
        %541 = vmatpush1.xpose.msra.mxu0 %v382
        %542 = vmatprep.subr.mxu0 0.0
        %543 = vmatpush1.xpose.msra.mxu0 %v383
        %544 = vmatprep.subr.mxu0 0.0
        %545 = vmatpush1.xpose.msra.mxu0 %v384
        %546 = vmatprep.subr.mxu0 0.0
        %547 = vmatpush1.xpose.msra.mxu0 %v385
        %548 = vmatprep.subr.mxu0 0.0
        %549 = vmatpush1.xpose.msra.mxu0 %v386
        %550 = vmatprep.subr.mxu0 0.0
        %551 = vmatpush1.xpose.msra.mxu0 %v387
        %552 = vmatprep.subr.mxu0 0.0
        %553 = vmatpush1.xpose.msra.mxu0 %v388
        %554 = vmatprep.subr.mxu0 0.0
        %555 = vmatpush1.xpose.msra.mxu0 %v389
        %556 = vmatprep.subr.mxu0 0.0
        %557 = vmatpush1.xpose.msra.mxu0 %v390
        %558 = vmatprep.subr.mxu0 0.0
        %559 = vmatpush1.xpose.msra.mxu0 %v391
        %560 = vmatprep.subr.mxu0 0.0
        %561 = vmatpush1.xpose.msra.mxu0 %v392
        %562 = vmatprep.subr.mxu0 0.0
        %563 = vmatpush1.xpose.msra.mxu0 %v393
        %564 = vmatprep.subr.mxu0 0.0
        %565 = vmatpush1.xpose.msra.mxu0 %v394
        %566 = vmatprep.subr.mxu0 0.0
        %567 = vmatpush1.xpose.msra.mxu0 %v395
        %568 = vmatprep.subr.mxu0 0.0
        %569 = vmatpush1.xpose.msra.mxu0 %v396
        %570 = vmatprep.subr.mxu0 0.0
        %571 = vmatpush1.xpose.msra.mxu0 %v397
        %572 = vmatprep.subr.mxu0 0.0
        %573 = vmatpush1.xpose.msra.mxu0 %v398
        %574 = vmatprep.mubr.f32.mxu0 0.0
        %575 = vmatmul.mubr.f32.gmra.mrb[0].mxu0 %v331
        %v576 = vpop.f32.mrb[0].mxu0
        %v577 = vadd.f32 %v412, %v576
        %v578 = vpop.f32.mrb[0].mxu0
        %v579 = vadd.f32 %v416, %v578
        %580 = vmatprep.mubr.f32.mxu0 0.0
        %581 = vmatmul.mubr.f32.gmra.mrb[0].mxu0 %v332
        %v582 = vpop.f32.mrb[0].mxu0
        %v583 = vadd.f32 %v412, %v582
        %v584 = vpop.f32.mrb[0].mxu0
        %v585 = vadd.f32 %v416, %v584
        %586 = vmatprep.mubr.f32.mxu0 0.0
        %587 = vmatmul.mubr.f32.gmra.mrb[0].mxu0 %v333
        %v588 = vpop.f32.mrb[0].mxu0
        %v589 = vadd.f32 %v412, %v588
        %v590 = vpop.f32.mrb[0].mxu0
        %v591 = vadd.f32 %v416, %v590
        %592 = vmatprep.mubr.f32.mxu0 0.0
        %593 = vmatmul.mubr.f32.gmra.mrb[0].mxu0 %v334
        %v594 = vpop.f32.mrb[0].mxu0
        %v595 = vadd.f32 %v412, %v594
        %v596 = vpop.f32.mrb[0].mxu0
        %v597 = vadd.f32 %v416, %v596
        %598 = vdwg.mxu0
        %vm599 = vcmp.gt.f32.partialorder %v488, 0.0
        %vm600 = vcmp.gt.f32.partialorder %v490, 0.0
        %vm601 = vcmp.gt.f32.partialorder %v577, 0.0
        %vm602 = vcmp.gt.f32.partialorder %v579, 0.0
        %vm603 = vcmp.gt.f32.partialorder %v494, 0.0
        %vm604 = vcmp.gt.f32.partialorder %v496, 0.0
        %vm605 = vcmp.gt.f32.partialorder %v583, 0.0
        %vm606 = vcmp.gt.f32.partialorder %v585, 0.0
        %vm607 = vcmp.gt.f32.partialorder %v500, 0.0
        %vm608 = vcmp.gt.f32.partialorder %v502, 0.0
        %vm609 = vcmp.gt.f32.partialorder %v589, 0.0
        %vm610 = vcmp.gt.f32.partialorder %v591, 0.0
        %vm611 = vcmp.gt.f32.partialorder %v506, 0.0
        %vm612 = vcmp.gt.f32.partialorder %v508, 0.0
        %vm613 = vcmp.gt.f32.partialorder %v595, 0.0
        %vm614 = vcmp.gt.f32.partialorder %v597, 0.0
        %v615 = vmul.f32 %v488, 0.01
        %v616 = vmul.f32 %v490, 0.01
        %v617 = vmul.f32 %v577, 0.01
        %v618 = vmul.f32 %v579, 0.01
        %v619 = vmul.f32 %v494, 0.01
        %v620 = vmul.f32 %v496, 0.01
        %v621 = vmul.f32 %v583, 0.01
        %v622 = vmul.f32 %v585, 0.01
        %v623 = vmul.f32 %v500, 0.01
        %v624 = vmul.f32 %v502, 0.01
        %v625 = vmul.f32 %v589, 0.01
        %v626 = vmul.f32 %v591, 0.01
        %v627 = vmul.f32 %v506, 0.01
        %v628 = vmul.f32 %v508, 0.01
        %v629 = vmul.f32 %v595, 0.01
        %v630 = vmul.f32 %v597, 0.01
        %v631 = vsel %vm599, %v488, %v615
        %v632 = vsel %vm600, %v490, %v616
        %v633 = vsel %vm601, %v577, %v617
        %v634 = vsel %vm602, %v579, %v618
        %v635 = vsel %vm603, %v494, %v619
        %v636 = vsel %vm604, %v496, %v620
        %v637 = vsel %vm605, %v583, %v621
        %v638 = vsel %vm606, %v585, %v622
        %v639 = vsel %vm607, %v500, %v623
        %v640 = vsel %vm608, %v502, %v624
        %v641 = vsel %vm609, %v589, %v625
        %v642 = vsel %vm610, %v591, %v626
        %v643 = vsel %vm611, %v506, %v627
        %v644 = vsel %vm612, %v508, %v628
        %v645 = vsel %vm613, %v595, %v629
        %v646 = vsel %vm614, %v597, %v630
        %v647 = vld [vmem:[#allocation2] sm:$0xff]
        %v648 = vld [vmem:[#allocation2 + $0x8] sm:$0xff]
        %v649 = vld [vmem:[#allocation2 + $0x10] sm:$0xff]
        %v650 = vld [vmem:[#allocation2 + $0x18] sm:$0xff]
        %v651 = vld [vmem:[#allocation8] sm:$0xff]
        %v652 = vld [vmem:[#allocation8 + $0x8] sm:$0xff]
        %v653 = vld [vmem:[#allocation8 + $0x10] sm:$0xff]
        %v654 = vld [vmem:[#allocation8 + $0x18] sm:$0xff]
        %v655 = vld [vmem:[#allocation8 + $0x20] sm:$0xff]
        %v656 = vld [vmem:[#allocation8 + $0x28] sm:$0xff]
        %v657 = vld [vmem:[#allocation8 + $0x30] sm:$0xff]
        %v658 = vld [vmem:[#allocation8 + $0x38] sm:$0xff]
        %v659 = vld [vmem:[#allocation8 + $0x40] sm:$0xff]
        %v660 = vld [vmem:[#allocation8 + $0x48] sm:$0xff]
        %v661 = vld [vmem:[#allocation8 + $0x50] sm:$0xff]
        %v662 = vld [vmem:[#allocation8 + $0x58] sm:$0xff]
        %v663 = vld [vmem:[#allocation8 + $0x60] sm:$0xff]
        %v664 = vld [vmem:[#allocation8 + $0x68] sm:$0xff]
        %v665 = vld [vmem:[#allocation8 + $0x70] sm:$0xff]
        %v666 = vld [vmem:[#allocation8 + $0x78] sm:$0xff]
        %v667 = vld [vmem:[#allocation8 + $0x80] sm:$0xff]
        %v668 = vld [vmem:[#allocation8 + $0x88] sm:$0xff]
        %v669 = vld [vmem:[#allocation8 + $0x90] sm:$0xff]
        %v670 = vld [vmem:[#allocation8 + $0x98] sm:$0xff]
        %v671 = vld [vmem:[#allocation8 + $0xa0] sm:$0xff]
        %v672 = vld [vmem:[#allocation8 + $0xa8] sm:$0xff]
        %v673 = vld [vmem:[#allocation8 + $0xb0] sm:$0xff]
        %v674 = vld [vmem:[#allocation8 + $0xb8] sm:$0xff]
        %v675 = vld [vmem:[#allocation8 + $0xc0] sm:$0xff]
        %v676 = vld [vmem:[#allocation8 + $0xc8] sm:$0xff]
        %v677 = vld [vmem:[#allocation8 + $0xd0] sm:$0xff]
        %v678 = vld [vmem:[#allocation8 + $0xd8] sm:$0xff]
        %v679 = vld [vmem:[#allocation8 + $0xe0] sm:$0xff]
        %v680 = vld [vmem:[#allocation8 + $0xe8] sm:$0xff]
        %v681 = vld [vmem:[#allocation8 + $0xf0] sm:$0xff]
        %v682 = vld [vmem:[#allocation8 + $0xf8] sm:$0xff]
        %v683 = vld [vmem:[#allocation8 + $0x100] sm:$0xff]
        %v684 = vld [vmem:[#allocation8 + $0x108] sm:$0xff]
        %v685 = vld [vmem:[#allocation8 + $0x110] sm:$0xff]
        %v686 = vld [vmem:[#allocation8 + $0x118] sm:$0xff]
        %v687 = vld [vmem:[#allocation8 + $0x120] sm:$0xff]
        %v688 = vld [vmem:[#allocation8 + $0x128] sm:$0xff]
        %v689 = vld [vmem:[#allocation8 + $0x130] sm:$0xff]
        %v690 = vld [vmem:[#allocation8 + $0x138] sm:$0xff]
        %v691 = vld [vmem:[#allocation8 + $0x140] sm:$0xff]
        %v692 = vld [vmem:[#allocation8 + $0x148] sm:$0xff]
        %v693 = vld [vmem:[#allocation8 + $0x150] sm:$0xff]
        %v694 = vld [vmem:[#allocation8 + $0x158] sm:$0xff]
        %v695 = vld [vmem:[#allocation8 + $0x160] sm:$0xff]
        %v696 = vld [vmem:[#allocation8 + $0x168] sm:$0xff]
        %v697 = vld [vmem:[#allocation8 + $0x170] sm:$0xff]
        %v698 = vld [vmem:[#allocation8 + $0x178] sm:$0xff]
        %v699 = vld [vmem:[#allocation8 + $0x180] sm:$0xff]
        %v700 = vld [vmem:[#allocation8 + $0x188] sm:$0xff]
        %v701 = vld [vmem:[#allocation8 + $0x190] sm:$0xff]
        %v702 = vld [vmem:[#allocation8 + $0x198] sm:$0xff]
        %v703 = vld [vmem:[#allocation8 + $0x1a0] sm:$0xff]
        %v704 = vld [vmem:[#allocation8 + $0x1a8] sm:$0xff]
        %v705 = vld [vmem:[#allocation8 + $0x1b0] sm:$0xff]
        %v706 = vld [vmem:[#allocation8 + $0x1b8] sm:$0xff]
        %v707 = vld [vmem:[#allocation8 + $0x1c0] sm:$0xff]
        %v708 = vld [vmem:[#allocation8 + $0x1c8] sm:$0xff]
        %v709 = vld [vmem:[#allocation8 + $0x1d0] sm:$0xff]
        %v710 = vld [vmem:[#allocation8 + $0x1d8] sm:$0xff]
        %v711 = vld [vmem:[#allocation8 + $0x1e0] sm:$0xff]
        %v712 = vld [vmem:[#allocation8 + $0x1e8] sm:$0xff]
        %v713 = vld [vmem:[#allocation8 + $0x1f0] sm:$0xff]
        %v714 = vld [vmem:[#allocation8 + $0x1f8] sm:$0xff]
        %715 = vmatprep.subr.mxu0 %v652
        %716 = vmatpush1.xpose.msra.mxu0 %v651
        %717 = vmatprep.subr.mxu0 %v656
        %718 = vmatpush1.xpose.msra.mxu0 %v655
        %719 = vmatprep.subr.mxu0 %v660
        %720 = vmatpush1.xpose.msra.mxu0 %v659
        %721 = vmatprep.subr.mxu0 %v664
        %722 = vmatpush1.xpose.msra.mxu0 %v663
        %723 = vmatprep.subr.mxu0 %v668
        %724 = vmatpush1.xpose.msra.mxu0 %v667
        %725 = vmatprep.subr.mxu0 %v672
        %726 = vmatpush1.xpose.msra.mxu0 %v671
        %727 = vmatprep.subr.mxu0 %v676
        %728 = vmatpush1.xpose.msra.mxu0 %v675
        %729 = vmatprep.subr.mxu0 %v680
        %730 = vmatpush1.xpose.msra.mxu0 %v679
        %731 = vmatprep.subr.mxu0 %v684
        %732 = vmatpush1.xpose.msra.mxu0 %v683
        %733 = vmatprep.subr.mxu0 %v688
        %734 = vmatpush1.xpose.msra.mxu0 %v687
        %735 = vmatprep.subr.mxu0 %v692
        %736 = vmatpush1.xpose.msra.mxu0 %v691
        %737 = vmatprep.subr.mxu0 %v696
        %738 = vmatpush1.xpose.msra.mxu0 %v695
        %739 = vmatprep.subr.mxu0 %v700
        %740 = vmatpush1.xpose.msra.mxu0 %v699
        %741 = vmatprep.subr.mxu0 %v704
        %742 = vmatpush1.xpose.msra.mxu0 %v703
        %743 = vmatprep.subr.mxu0 %v708
        %744 = vmatpush1.xpose.msra.mxu0 %v707
        %745 = vmatprep.subr.mxu0 %v712
        %746 = vmatpush1.xpose.msra.mxu0 %v711
        %747 = vmatprep.subr.mxu0 0.0
        %748 = vmatpush1.xpose.msra.mxu0 0.0
        %749 = vmatprep.subr.mxu0 0.0
        %750 = vmatpush1.xpose.msra.mxu0 0.0
        %751 = vmatprep.subr.mxu0 0.0
        %752 = vmatpush1.xpose.msra.mxu0 0.0
        %753 = vmatprep.subr.mxu0 0.0
        %754 = vmatpush1.xpose.msra.mxu0 0.0
        %755 = vmatprep.subr.mxu0 0.0
        %756 = vmatpush1.xpose.msra.mxu0 0.0
        %757 = vmatprep.subr.mxu0 0.0
        %758 = vmatpush1.xpose.msra.mxu0 0.0
        %759 = vmatprep.subr.mxu0 0.0
        %760 = vmatpush1.xpose.msra.mxu0 0.0
        %761 = vmatprep.subr.mxu0 0.0
        %762 = vmatpush1.xpose.msra.mxu0 0.0
        %763 = vmatprep.subr.mxu0 0.0
        %764 = vmatpush1.xpose.msra.mxu0 0.0
        %765 = vmatprep.subr.mxu0 0.0
        %766 = vmatpush1.xpose.msra.mxu0 0.0
        %767 = vmatprep.subr.mxu0 0.0
        %768 = vmatpush1.xpose.msra.mxu0 0.0
        %769 = vmatprep.subr.mxu0 0.0
        %770 = vmatpush1.xpose.msra.mxu0 0.0
        %771 = vmatprep.subr.mxu0 0.0
        %772 = vmatpush1.xpose.msra.mxu0 0.0
        %773 = vmatprep.subr.mxu0 0.0
        %774 = vmatpush1.xpose.msra.mxu0 0.0
        %775 = vmatprep.subr.mxu0 0.0
        %776 = vmatpush1.xpose.msra.mxu0 0.0
        %777 = vmatprep.subr.mxu0 0.0
        %778 = vmatpush1.xpose.msra.mxu0 0.0
        %779 = vmatprep.mubr.f32.mxu0 %v632
        %780 = vmatmul.mubr.f32.gmra.mrb[0].mxu0 %v631
        %v781 = vpop.f32.mrb[0].mxu0
        %v782 = vadd.f32 0.0, %v781
        %v783 = vpop.f32.mrb[0].mxu0
        %784 = vmatprep.mubr.f32.mxu0 %v636
        %785 = vmatmul.mubr.f32.gmra.mrb[0].mxu0 %v635
        %v786 = vpop.f32.mrb[0].mxu0
        %v787 = vadd.f32 0.0, %v786
        %v788 = vpop.f32.mrb[0].mxu0
        %789 = vmatprep.mubr.f32.mxu0 %v640
        %790 = vmatmul.mubr.f32.gmra.mrb[0].mxu0 %v639
        %v791 = vpop.f32.mrb[0].mxu0
        %v792 = vadd.f32 0.0, %v791
        %v793 = vpop.f32.mrb[0].mxu0
        %794 = vmatprep.mubr.f32.mxu0 %v644
        %795 = vmatmul.mubr.f32.gmra.mrb[0].mxu0 %v643
        %v796 = vpop.f32.mrb[0].mxu0
        %v797 = vadd.f32 0.0, %v796
        %v798 = vpop.f32.mrb[0].mxu0
        %799 = vdwg.mxu0
        %800 = vmatprep.subr.mxu0 %v654
        %801 = vmatpush1.xpose.msra.mxu0 %v653
        %802 = vmatprep.subr.mxu0 %v658
        %803 = vmatpush1.xpose.msra.mxu0 %v657
        %804 = vmatprep.subr.mxu0 %v662
        %805 = vmatpush1.xpose.msra.mxu0 %v661
        %806 = vmatprep.subr.mxu0 %v666
        %807 = vmatpush1.xpose.msra.mxu0 %v665
        %808 = vmatprep.subr.mxu0 %v670
        %809 = vmatpush1.xpose.msra.mxu0 %v669
        %810 = vmatprep.subr.mxu0 %v674
        %811 = vmatpush1.xpose.msra.mxu0 %v673
        %812 = vmatprep.subr.mxu0 %v678
        %813 = vmatpush1.xpose.msra.mxu0 %v677
        %814 = vmatprep.subr.mxu0 %v682
        %815 = vmatpush1.xpose.msra.mxu0 %v681
        %816 = vmatprep.subr.mxu0 %v686
        %817 = vmatpush1.xpose.msra.mxu0 %v685
        %818 = vmatprep.subr.mxu0 %v690
        %819 = vmatpush1.xpose.msra.mxu0 %v689
        %820 = vmatprep.subr.mxu0 %v694
        %821 = vmatpush1.xpose.msra.mxu0 %v693
        %822 = vmatprep.subr.mxu0 %v698
        %823 = vmatpush1.xpose.msra.mxu0 %v697
        %824 = vmatprep.subr.mxu0 %v702
        %825 = vmatpush1.xpose.msra.mxu0 %v701
        %826 = vmatprep.subr.mxu0 %v706
        %827 = vmatpush1.xpose.msra.mxu0 %v705
        %828 = vmatprep.subr.mxu0 %v710
        %829 = vmatpush1.xpose.msra.mxu0 %v709
        %830 = vmatprep.subr.mxu0 %v714
        %831 = vmatpush1.xpose.msra.mxu0 %v713
        %832 = vmatprep.subr.mxu0 0.0
        %833 = vmatpush1.xpose.msra.mxu0 0.0
        %834 = vmatprep.subr.mxu0 0.0
        %835 = vmatpush1.xpose.msra.mxu0 0.0
        %836 = vmatprep.subr.mxu0 0.0
        %837 = vmatpush1.xpose.msra.mxu0 0.0
        %838 = vmatprep.subr.mxu0 0.0
        %839 = vmatpush1.xpose.msra.mxu0 0.0
        %840 = vmatprep.subr.mxu0 0.0
        %841 = vmatpush1.xpose.msra.mxu0 0.0
        %842 = vmatprep.subr.mxu0 0.0
        %843 = vmatpush1.xpose.msra.mxu0 0.0
        %844 = vmatprep.subr.mxu0 0.0
        %845 = vmatpush1.xpose.msra.mxu0 0.0
        %846 = vmatprep.subr.mxu0 0.0
        %847 = vmatpush1.xpose.msra.mxu0 0.0
        %848 = vmatprep.subr.mxu0 0.0
        %849 = vmatpush1.xpose.msra.mxu0 0.0
        %850 = vmatprep.subr.mxu0 0.0
        %851 = vmatpush1.xpose.msra.mxu0 0.0
        %852 = vmatprep.subr.mxu0 0.0
        %853 = vmatpush1.xpose.msra.mxu0 0.0
        %854 = vmatprep.subr.mxu0 0.0
        %855 = vmatpush1.xpose.msra.mxu0 0.0
        %856 = vmatprep.subr.mxu0 0.0
        %857 = vmatpush1.xpose.msra.mxu0 0.0
        %858 = vmatprep.subr.mxu0 0.0
        %859 = vmatpush1.xpose.msra.mxu0 0.0
        %860 = vmatprep.subr.mxu0 0.0
        %861 = vmatpush1.xpose.msra.mxu0 0.0
        %862 = vmatprep.subr.mxu0 0.0
        %863 = vmatpush1.xpose.msra.mxu0 0.0
        %864 = vmatprep.mubr.f32.mxu0 %v634
        %865 = vmatmul.mubr.f32.gmra.mrb[0].mxu0 %v633
        %v866 = vpop.f32.mrb[0].mxu0
        %v867 = vadd.f32 %v782, %v866
        %v868 = vpop.f32.mrb[0].mxu0
        %869 = vmatprep.mubr.f32.mxu0 %v638
        %870 = vmatmul.mubr.f32.gmra.mrb[0].mxu0 %v637
        %v871 = vpop.f32.mrb[0].mxu0
        %v872 = vadd.f32 %v787, %v871
        %v873 = vpop.f32.mrb[0].mxu0
        %874 = vmatprep.mubr.f32.mxu0 %v642
        %875 = vmatmul.mubr.f32.gmra.mrb[0].mxu0 %v641
        %v876 = vpop.f32.mrb[0].mxu0
        %v877 = vadd.f32 %v792, %v876
        %v878 = vpop.f32.mrb[0].mxu0
        %879 = vmatprep.mubr.f32.mxu0 %v646
        %880 = vmatmul.mubr.f32.gmra.mrb[0].mxu0 %v645
        %v881 = vpop.f32.mrb[0].mxu0
        %v882 = vadd.f32 %v797, %v881
        %v883 = vpop.f32.mrb[0].mxu0
        %884 = vdwg.mxu0
        %v885 = vadd.f32 %v647, %v867
        %v886 = vadd.f32 %v648, %v872
        %v887 = vadd.f32 %v649, %v877
        %v888 = vadd.f32 %v650, %v882
        %889 = vst [vmem:[#allocation2] sm:$0xff] %v885
        %890 = vst [vmem:[#allocation2 + $0x8] sm:$0xff] %v886
        %891 = vst [vmem:[#allocation2 + $0x10] sm:$0xff] %v887
        %892 = vst [vmem:[#allocation2 + $0x18] sm:$0xff] %v888
        // Predicated region
        $region57: #{tpu_custom_call.1} parent=39 // pred_check
          %p893 = pneg %p323
        $region58: #{tpu_custom_call.1} parent=39 // pred_check_branch
          %895 = sbr.rel (%p893) target = $region60
        $region59: #{tpu_custom_call.1} parent=39 // pred_region
          %v896 = vld [vmem:[#allocation2] sm:$0xff]
          %v897 = vld [vmem:[#allocation2 + $0x8] sm:$0xff]
          %v898 = vld [vmem:[#allocation2 + $0x10] sm:$0xff]
          %v899 = vld [vmem:[#allocation2 + $0x18] sm:$0xff]
          %v900 = vld [vmem:[%s4] sm:$0x1]
          %v902 = vlaneseq
          %v903 = vshrl.u32 %v902, 7
          %v904 = vsub.s32 0, %v903
          %v905 = vrot.slane %v900, %v904
          %v907 = vadd.f32 %v896, %v905
          %v908 = vadd.f32 %v897, %v905
          %v909 = vadd.f32 %v898, %v905
          %v910 = vadd.f32 %v899, %v905
          %911 = vst [vmem:[%s313] sm:$0xff] %v907
          %912 = vst [vmem:[%s313 + $0x8] sm:$0xff] %v908
          %913 = vst [vmem:[%s313 + $0x10] sm:$0xff] %v909
          %914 = vst [vmem:[%s313 + $0x18] sm:$0xff] %v910
        $region60: #{tpu_custom_call.1} parent=39 // pred_fallthru
          _
        %s915 = sand.u32 %s168, 1
        %s916 = scalar_lea.sflag [#allocation5], %s915
        %s917 = sand.u32 %s168, 1
        %s918 = smul.addr %s917, 32
        %s919 = scalar_lea.vmem [#allocation9], %s918
        // Predicated region
        $region61: #{tpu_custom_call.1} parent=39 // pred_check
          %p920 = pneg %p178
        $region62: #{tpu_custom_call.1} parent=39 // pred_check_branch
          %922 = sbr.rel (%p920) target = $region64
        $region63: #{tpu_custom_call.1} parent=39 // pred_region
          %s923 = smul.u32 4, %s27
          %s925 = ssub.s32 512, 512
          %926 = vsyncadd %s916, %s925
          %s927 = smul.addr %s923, 128
          %s928 = scalar_lea.hbm %s5, %s927
          %s929 = sshll.u32 %s919, 4
          %s930 = int_to_ptr.vmem [resolvable:$true] %s929
          %935 = dma.vmem_to_hbm [thread:$0]  %s930, 512, %s928, %s916, 128, 128, 8
        $region64: #{tpu_custom_call.1} parent=39 // pred_fallthru
          _
      $region40: #{tpu_custom_call.1} parent=5 // pred_fallthru
        _
      %p936 = scmp.le.s32.totalorder 2, %s18
      // Predicated region
      $region65: #{tpu_custom_call.1} parent=5 // pred_check
        %p937 = pneg %p936
      $region66: #{tpu_custom_call.1} parent=5 // pred_check_branch
        %939 = sbr.rel (%p937) target = $region68
      $region67: #{tpu_custom_call.1} parent=5 // pred_region
        %s940 = ssub.s32 %s18, 2
        // Predicated region
        $region69: #{tpu_custom_call.1} parent=67 // pred_check
          %p941 = pneg %p184
        $region70: #{tpu_custom_call.1} parent=67 // pred_check_branch
          %943 = sbr.rel (%p941) target = $region72
        $region71: #{tpu_custom_call.1} parent=67 // pred_region
          %s944 = sand.u32 %s169, 1
          %s945 = scalar_lea.sflag [#allocation5], %s944
          %s946 = sand.u32 %s169, 1
          %s947 = smul.addr %s946, 32
          %s948 = scalar_lea.vmem [#allocation9], %s947
          %949 = dma.done %s945, 512
        $region72: #{tpu_custom_call.1} parent=67 // pred_fallthru
          _
      $region68: #{tpu_custom_call.1} parent=5 // pred_fallthru
        _
    $region6: #{tpu_custom_call.1} parent=1 // loop_footer
      %s22 = sadd.s32 1, %s18
    $region7: #{tpu_custom_call.1} parent=1 // loop_footer_branch
      %17 = sbr.rel target = $region3
    $region8: #{tpu_custom_call.1} parent=1 // loop_exit
      _
    %950 = vsyncpa [#allocation4], 1
    %s951 = scalar_lea.sflag [#allocation4], 1
    %952 = vsyncpa %s951, 1
    %953 = vsyncpa [#allocation7], 1
    %954 = vsyncpa [#allocation5], 1
    %s955 = scalar_lea.sflag [#allocation5], 1
    %956 = vsyncpa %s955, 1

</llo_original>
